<compile_context>
chip_gen: v5e
topology: v5e:2x2
jax: 0.10.0
libtpu: 0.0.40
codegen_flags: <defaults>
</compile_context>

<pallas_src>
import functools

import jax
import jax.numpy as jnp
import numpy as np
from jax import lax
from jax.experimental import pallas as pl
from jax.experimental.pallas import tpu as pltpu


def _dice_partials_kernel(score_ref, target_ref, out_ref, acc_ref, *,
                          apply_softmax, chunk):
    """Grid = (parallel_chunk, spatial_step).

    score_ref/target_ref: (B, C, TILE_R, LANE) block in the original HBM dtype.
    out_ref:  (1, 3, C, LANE) f32 output block for this parallel chunk (same
              block for every spatial step; written once at the last step).
    acc_ref:  (3, C, LANE) f32 VMEM scratch accumulator (persists across steps).
    """
    h = pl.program_id(1)
    B, C, TR, LANE = score_ref.shape
    n_chunks = TR // chunk
    # Manual partial unroll: a few chunks per fori_loop iteration amortizes the
    # loop overhead while the live vreg set stays small (no spills).
    u = 4 if n_chunks % 4 == 0 else (2 if n_chunks % 2 == 0 else 1)
    n_super = n_chunks // u

    @pl.when(h == 0)
    def _init():
        acc_ref[...] = jnp.zeros_like(acc_ref)

    def one_chunk(r0, carry):
        i_acc, y_acc, z_acc = carry            # (C, chunk, LANE) f32 each
        for b in range(B):                     # static; whole batch is in-block
            s = score_ref[b, :, pl.ds(r0, chunk), :].astype(jnp.float32)
            t = target_ref[b, :, pl.ds(r0, chunk), :].astype(jnp.float32)
            if apply_softmax:
                # Fused softmax over the class axis (axis 0 of the slab) --
                # cheap VALU tree over C vreg tiles, exp/recip on the EUP.
                m = jnp.max(s, axis=0, keepdims=True)
                e = jnp.exp(s - m)
                denom = jnp.sum(e, axis=0, keepdims=True)
                s = e * pl.reciprocal(denom, approx=True)
            i_acc = i_acc + s * t
            y_acc = y_acc + t * t
            z_acc = z_acc + s * s
        return i_acc, y_acc, z_acc

    def super_body(si, carry):
        base = pl.multiple_of(si * (u * chunk), u * chunk)
        for j in range(u):                     # static partial unroll
            carry = one_chunk(pl.multiple_of(base + j * chunk, chunk), carry)
        return carry

    zero = jnp.zeros((C, chunk, LANE), jnp.float32)
    i_acc, y_acc, z_acc = lax.fori_loop(
        0, n_super, super_body, (zero, zero, zero), unroll=(n_super <= 4))

    # Per grid step: one sublane reduce + one dense accumulate per statistic
    # (no per-class masked single-row read-modify-writes).
    acc_ref[0] += jnp.sum(i_acc, axis=1)       # sum(score * target), (C, LANE)
    acc_ref[1] += jnp.sum(y_acc, axis=1)       # sum(target^2)
    acc_ref[2] += jnp.sum(z_acc, axis=1)       # sum(score^2)

    @pl.when(h == pl.num_programs(1) - 1)
    def _finalize():
        out_ref[0] = acc_ref[...]


def _vmem_capacity_bytes():
    """Best-effort per-TensorCore VMEM capacity; defaults to the smallest
    current part (v7x, 64 MiB) if the query is unavailable."""
    try:
        info = pltpu.get_tpu_info()
        cap = getattr(info, "vmem_capacity_bytes", None)
        if cap:
            return int(cap)
    except Exception:
        pass
    return 64 << 20


def _choose_tile_r(R, row_bytes, sublane, target_bytes):
    """Largest tile_r dividing R, a multiple of `sublane` (falling back to 8),
    whose combined score+target block stays around target_bytes; prefers a
    tile count that is even so the "parallel" grid axis can split across v7x's
    two TensorCores."""
    max_rows = max(1, target_bytes // row_bytes)
    if R <= max_rows:
        return R
    for step in sorted({sublane, 8}, reverse=True):
        best = None
        best_even = None
        d = step
        while d <= max_rows:
            if R % d == 0:
                best = d
                if (R // d) % 2 == 0:
                    best_even = d
            d += step
        if best_even is not None:
            return best_even
        if best is not None:
            return best
    # Nothing under budget: take the smallest legal tile rather than the full
    # extent so very large inputs still fit VMEM (block may exceed the budget).
    for step in sorted({sublane, 8}):
        if R % step == 0:
            return step
    # TODO(synk): R with no multiple-of-8 divisor falls back to a single
    # full-extent block, which may exceed VMEM for pathological shapes.
    return R


def dice_loss(inputs, target, weight=None, softmax=False,
              tile_r=None, n_parallel=None, target_block_bytes=None):
    """Pallas implementation of DiceLoss(n_classes=C).forward(inputs, target)."""
    if inputs.shape != target.shape:
        raise ValueError("predict & target shape do not match")
    B, C, H, W = inputs.shape
    S = H * W

    if weight is None:
        weight_arr = jnp.ones((C,), jnp.float32)
    else:
        weight_arr = jnp.asarray(weight, jnp.float32).reshape(-1)
        if weight_arr.shape[0] != C:
            raise ValueError(f"weight has length {weight_arr.shape[0]}, expected {C}")

    # Lane-dense layout: flatten (H, W) and re-split as (R, 128) when possible
    # (free reshape of contiguous NCHW; class-softmax alignment is preserved).
    lane = 128 if S % 128 == 0 else W
    R = S // lane
    x = inputs.reshape(B, C, R, lane)
    t = target.reshape(B, C, R, lane)

    # Sublane packing (rows per vreg) of the narrower input dtype.
    sub = max(8, 32 // x.dtype.itemsize, 32 // t.dtype.itemsize)

    vmem_cap = _vmem_capacity_bytes()
    if target_block_bytes is None:
        # Combined (score + target) per-step block budget: bigger on the
        # 128 MiB-VMEM parts (v5e/v6e), smaller on v7x's 64 MiB.
        target_block_bytes = (8 << 20) if vmem_cap >= (96 << 20) else (4 << 20)

    itembytes = x.dtype.itemsize + t.dtype.itemsize
    row_bytes = max(1, B * C * lane * itembytes)
    if tile_r is None:
        tile_r = _choose_tile_r(R, row_bytes, sub, target_block_bytes)
    if R % tile_r != 0:
        raise ValueError("tile_r must divide the flattened spatial extent")
    if tile_r != R and tile_r % 8 != 0:
        raise ValueError("tile_r must be a multiple of 8 (or the full extent)")

    n_tiles = R // tile_r
    if n_parallel is None:
        # 2 keeps both v7x TensorCores busy; on single-TC v5e/v6e the extra
        # accumulator init/writeback is negligible.
        n_parallel = 2 if (n_tiles % 2 == 0 and n_tiles >= 2) else 1
    if n_tiles % n_parallel != 0:
        raise ValueError("n_parallel must divide the number of spatial tiles")
    n_inner = n_tiles // n_parallel

    chunk = sub if tile_r % sub == 0 else tile_r

    in_block = B * C * tile_r * lane * itembytes
    small = 3 * C * lane * 4                              # acc / out blocks
    need = 2 * in_block + 4 * small + (2 << 20)           # double-buffered inputs
    vmem_limit = max(need, 32 << 20)
    cap = int(0.85 * vmem_cap)                            # headroom for Mosaic scratch
    if need <= cap:
        vmem_limit = min(vmem_limit, cap)
    # NOTE: pipeline_mode=pl.Buffered(3) on the input specs could hide DMA
    # jitter for small blocks; only add it if a profile shows exposed waits.

    kernel = functools.partial(_dice_partials_kernel,
                               apply_softmax=bool(softmax), chunk=chunk)

    def in_index(p, h):
        return (0, 0, p * n_inner + h, 0)

    partials = pl.pallas_call(
        kernel,
        out_shape=jax.ShapeDtypeStruct((n_parallel, 3, C, lane), jnp.float32),
        grid=(n_parallel, n_inner),
        in_specs=[
            pl.BlockSpec((B, C, tile_r, lane), in_index),
            pl.BlockSpec((B, C, tile_r, lane), in_index),
        ],
        out_specs=pl.BlockSpec((1, 3, C, lane), lambda p, h: (p, 0, 0, 0)),
        scratch_shapes=[pltpu.VMEM((3, C, lane), jnp.float32)],
        compiler_params=pltpu.CompilerParams(
            dimension_semantics=("parallel", "arbitrary"),
            vmem_limit_bytes=int(vmem_limit),
        ),
    )(x, t)

    # Tiny epilogue: cross-lane reduce + dice ratio + weighting + /n_classes.
    sums = jnp.sum(partials, axis=(0, 3))                 # (3, C)
    intersect, y_sum, z_sum = sums[0], sums[1], sums[2]
    smooth = jnp.float32(1e-10)
    dice = 1.0 - (2.0 * intersect + smooth) / (z_sum + y_sum + smooth)
    return jnp.sum(dice * weight_arr) / C


def dice_loss_ref(inputs, target, weight=None, softmax=False):
    """Pure-JAX reference mirroring the PyTorch module."""
    B, C, H, W = inputs.shape
    if softmax:
        inputs = jax.nn.softmax(inputs.astype(jnp.float32), axis=1)
    if weight is None:
        weight = [1.0] * C
    smooth = 1e-10
    loss = 0.0
    for i in range(C):
        s = inputs[:, i].astype(jnp.float32)
        t = target[:, i].astype(jnp.float32)
        intersect = jnp.sum(s * t)
        y_sum = jnp.sum(t * t)
        z_sum = jnp.sum(s * s)
        dice = 1.0 - (2 * intersect + smooth) / (z_sum + y_sum + smooth)
        loss = loss + dice * weight[i]
    return loss / C


def _make_inputs(B, C, H, W, key):
    k_logits, k_labels = jax.random.split(key)
    logits = jax.random.normal(k_logits, (B, C, H, W), dtype=jnp.float32)
    labels = jax.random.randint(k_labels, (B, H, W), 0, C)
    target = jnp.transpose(
        jax.nn.one_hot(labels, C, dtype=jnp.float32), (0, 3, 1, 2))  # (B,C,H,W)
    return logits, target


if __name__ == "__main__":
    key = jax.random.PRNGKey(0)
    k1, k2, k3 = jax.random.split(key, 3)

    # 1) Small shape, fused softmax, single block (R = 2, full-extent tile).
    logits, target = _make_inputs(2, 4, 16, 16, k1)
    out = jax.block_until_ready(dice_loss(logits, target, softmax=True))
    ref = jax.block_until_ready(dice_loss_ref(logits, target, softmax=True))
    np.testing.assert_allclose(np.asarray(out), np.asarray(ref), rtol=2e-3, atol=1e-3)

    # 2) Multi-tile spatial accumulation + 2-way parallel grid axis.
    logits2, target2 = _make_inputs(2, 4, 64, 64, k2)
    out2 = jax.block_until_ready(
        dice_loss(logits2, target2, softmax=True, tile_r=8, n_parallel=2))
    ref2 = jax.block_until_ready(dice_loss_ref(logits2, target2, softmax=True))
    np.testing.assert_allclose(np.asarray(out2), np.asarray(ref2), rtol=2e-3, atol=1e-3)

    # 3) No softmax (exact path) + per-class weights, sequential accumulation.
    w = [0.5, 1.0, 2.0, 1.5]
    probs = jax.nn.softmax(logits2, axis=1)
    out3 = jax.block_until_ready(
        dice_loss(probs, target2, weight=w, softmax=False, tile_r=8, n_parallel=1))
    ref3 = jax.block_until_ready(dice_loss_ref(probs, target2, weight=w, softmax=False))
    np.testing.assert_allclose(np.asarray(out3), np.asarray(ref3), rtol=1e-4, atol=1e-6)

    # 4) bf16 logits + bf16 one-hot target (halves target HBM traffic; 0/1 are
    #    exact in bf16).  The f32 cast happens in VMEM in-kernel.
    logits_bf16 = logits2.astype(jnp.bfloat16)
    target_bf16 = target2.astype(jnp.bfloat16)
    out4 = jax.block_until_ready(
        dice_loss(logits_bf16, target_bf16, softmax=True, tile_r=16))
    ref4 = jax.block_until_ready(dice_loss_ref(logits_bf16, target2, softmax=True))
    np.testing.assert_allclose(np.asarray(out4), np.asarray(ref4), rtol=2e-3, atol=1e-3)

    # 5) Fallback layout when H*W is not a multiple of 128 (lane dim = W).
    logits5, target5 = _make_inputs(2, 4, 12, 12, k3)
    out5 = jax.block_until_ready(dice_loss(logits5, target5, softmax=False))
    ref5 = jax.block_until_ready(dice_loss_ref(logits5, target5, softmax=False))
    np.testing.assert_allclose(np.asarray(out5), np.asarray(ref5), rtol=1e-4, atol=1e-6)

    # TODO(synk): optionally accept an integer (B, H, W) label map and build the
    # one-hot in-kernel (broadcasted iota compare) to cut target HBM traffic ~C-fold.
    print("KERNEL_OK")
</pallas_src>

<mosaic_0001>
module attributes {stable_mosaic.version = 11 : i64} {
  func.func @_dice_partials_kernel(%arg0: i32, %arg1: i32, %arg2: memref<2x4x2x128xf32, #tpu.memory_space<vmem>>, %arg3: memref<2x4x2x128xf32, #tpu.memory_space<vmem>>, %arg4: memref<1x3x4x128xf32, #tpu.memory_space<vmem>>, %arg5: memref<3x4x128xf32, #tpu.memory_space<vmem>>) attributes {dimension_semantics = [#tpu.dimension_semantics<parallel>, #tpu.dimension_semantics<arbitrary>], iteration_bounds = array<i64: 1, 1>, scalar_prefetch = 0 : i64, scratch_operands = 1 : i64, tpu.core_type = #tpu.core_type<tc>, window_params = [{transform_indices = @transform_0, window_bounds = array<i64: 2, 4, 2, 128>}, {transform_indices = @transform_1, window_bounds = array<i64: 2, 4, 2, 128>}, {transform_indices = @transform_2, window_bounds = array<i64: 1, 3, 4, 128>}]} {
    %c0_i32 = arith.constant 0 : i32
    %0 = arith.cmpi eq, %arg1, %c0_i32 : i32
    %1 = arith.extui %0 : i1 to i32
    %c0_i32_0 = arith.constant 0 : i32
    %2 = arith.cmpi ne, %1, %c0_i32_0 : i32
    scf.if %2 {
      %cst_39 = arith.constant 0.000000e+00 : f32
      %76 = vector.broadcast %cst_39 : f32 to vector<3x4x128xf32>
      %c0_40 = arith.constant 0 : index
      %c0_41 = arith.constant 0 : index
      %c0_42 = arith.constant 0 : index
      %77 = vector.load %arg5[%c0_40, %c0_41, %c0_42] : memref<3x4x128xf32, #tpu.memory_space<vmem>>, vector<3x4x128xf32>
      tpu.vector_store %arg5[%c0_40, %c0_41, %c0_42], %76 {strides = array<i32>} : memref<3x4x128xf32, #tpu.memory_space<vmem>>, vector<3x4x128xf32>,
    } else {
    }
    %cst = arith.constant 0.000000e+00 : f32
    %3 = vector.broadcast %cst : f32 to vector<4x2x128xf32>
    %c0_i32_1 = arith.constant 0 : i32
    %c2_i32 = arith.constant 2 : i32
    %4 = arith.muli %c0_i32_1, %c2_i32 : i32
    %5 = tpu.assume_multiple %4, 2 : i32
    %c0_i32_2 = arith.constant 0 : i32
    %6 = arith.addi %5, %c0_i32_2 : i32
    %7 = tpu.assume_multiple %6, 2 : i32
    %c0 = arith.constant 0 : index
    %c0_3 = arith.constant 0 : index
    %8 = arith.index_cast %7 : i32 to index
    %c0_4 = arith.constant 0 : index
    %9 = vector.load %arg2[%c0, %c0_3, %8, %c0_4] : memref<2x4x2x128xf32, #tpu.memory_space<vmem>>, vector<1x4x2x128xf32>
    %10 = vector.shape_cast %9 : vector<1x4x2x128xf32> to vector<4x2x128xf32>
    %c0_5 = arith.constant 0 : index
    %c0_6 = arith.constant 0 : index
    %11 = arith.index_cast %7 : i32 to index
    %c0_7 = arith.constant 0 : index
    %12 = vector.load %arg3[%c0_5, %c0_6, %11, %c0_7] : memref<2x4x2x128xf32, #tpu.memory_space<vmem>>, vector<1x4x2x128xf32>
    %13 = vector.shape_cast %12 : vector<1x4x2x128xf32> to vector<4x2x128xf32>
    %cst_8 = arith.constant dense<0xFF800000> : vector<2x128xf32>
    %14 = vector.multi_reduction <maximumf>, %10, %cst_8 [0] : vector<4x2x128xf32> to vector<2x128xf32>
    %15 = vector.shape_cast %14 : vector<2x128xf32> to vector<1x2x128xf32>
    %16 = vector.broadcast %15 : vector<1x2x128xf32> to vector<4x2x128xf32>
    %17 = arith.subf %10, %16 : vector<4x2x128xf32>
    %18 = math.exp %17 : vector<4x2x128xf32>
    %cst_9 = arith.constant dense<0.000000e+00> : vector<2x128xf32>
    %19 = vector.multi_reduction <add>, %18, %cst_9 [0] : vector<4x2x128xf32> to vector<2x128xf32>
    %20 = vector.shape_cast %19 : vector<2x128xf32> to vector<1x2x128xf32>
    %21 = tpu.reciprocal %20 {approx = true} : vector<1x2x128xf32> -> vector<1x2x128xf32>
    %22 = vector.broadcast %21 : vector<1x2x128xf32> to vector<4x2x128xf32>
    %23 = arith.mulf %18, %22 : vector<4x2x128xf32>
    %24 = arith.mulf %23, %13 : vector<4x2x128xf32>
    %25 = arith.addf %3, %24 : vector<4x2x128xf32>
    %26 = arith.mulf %13, %13 : vector<4x2x128xf32>
    %27 = arith.addf %3, %26 : vector<4x2x128xf32>
    %28 = arith.mulf %23, %23 : vector<4x2x128xf32>
    %29 = arith.addf %3, %28 : vector<4x2x128xf32>
    %c1 = arith.constant 1 : index
    %c0_10 = arith.constant 0 : index
    %30 = arith.index_cast %7 : i32 to index
    %c0_11 = arith.constant 0 : index
    %31 = vector.load %arg2[%c1, %c0_10, %30, %c0_11] : memref<2x4x2x128xf32, #tpu.memory_space<vmem>>, vector<1x4x2x128xf32>
    %32 = vector.shape_cast %31 : vector<1x4x2x128xf32> to vector<4x2x128xf32>
    %c1_12 = arith.constant 1 : index
    %c0_13 = arith.constant 0 : index
    %33 = arith.index_cast %7 : i32 to index
    %c0_14 = arith.constant 0 : index
    %34 = vector.load %arg3[%c1_12, %c0_13, %33, %c0_14] : memref<2x4x2x128xf32, #tpu.memory_space<vmem>>, vector<1x4x2x128xf32>
    %35 = vector.shape_cast %34 : vector<1x4x2x128xf32> to vector<4x2x128xf32>
    %cst_15 = arith.constant dense<0xFF800000> : vector<2x128xf32>
    %36 = vector.multi_reduction <maximumf>, %32, %cst_15 [0] : vector<4x2x128xf32> to vector<2x128xf32>
    %37 = vector.shape_cast %36 : vector<2x128xf32> to vector<1x2x128xf32>
    %38 = vector.broadcast %37 : vector<1x2x128xf32> to vector<4x2x128xf32>
    %39 = arith.subf %32, %38 : vector<4x2x128xf32>
    %40 = math.exp %39 : vector<4x2x128xf32>
    %cst_16 = arith.constant dense<0.000000e+00> : vector<2x128xf32>
    %41 = vector.multi_reduction <add>, %40, %cst_16 [0] : vector<4x2x128xf32> to vector<2x128xf32>
    %42 = vector.shape_cast %41 : vector<2x128xf32> to vector<1x2x128xf32>
    %43 = tpu.reciprocal %42 {approx = true} : vector<1x2x128xf32> -> vector<1x2x128xf32>
    %44 = vector.broadcast %43 : vector<1x2x128xf32> to vector<4x2x128xf32>
    %45 = arith.mulf %40, %44 : vector<4x2x128xf32>
    %46 = arith.mulf %45, %35 : vector<4x2x128xf32>
    %47 = arith.addf %25, %46 : vector<4x2x128xf32>
    %48 = arith.mulf %35, %35 : vector<4x2x128xf32>
    %49 = arith.addf %27, %48 : vector<4x2x128xf32>
    %50 = arith.mulf %45, %45 : vector<4x2x128xf32>
    %51 = arith.addf %29, %50 : vector<4x2x128xf32>
    %c1_i32 = arith.constant 1 : i32
    %c0_17 = arith.constant 0 : index
    %c0_18 = arith.constant 0 : index
    %c0_19 = arith.constant 0 : index
    %52 = vector.load %arg5[%c0_17, %c0_18, %c0_19] : memref<3x4x128xf32, #tpu.memory_space<vmem>>, vector<1x4x128xf32>
    %53 = vector.shape_cast %52 : vector<1x4x128xf32> to vector<4x128xf32>
    %cst_20 = arith.constant dense<0.000000e+00> : vector<4x128xf32>
    %54 = vector.multi_reduction <add>, %47, %cst_20 [1] : vector<4x2x128xf32> to vector<4x128xf32>
    %55 = arith.addf %53, %54 : vector<4x128xf32>
    %c0_21 = arith.constant 0 : index
    %c0_22 = arith.constant 0 : index
    %c0_23 = arith.constant 0 : index
    %56 = vector.load %arg5[%c0_21, %c0_22, %c0_23] : memref<3x4x128xf32, #tpu.memory_space<vmem>>, vector<1x4x128xf32>
    %57 = vector.shape_cast %56 : vector<1x4x128xf32> to vector<4x128xf32>
    %58 = vector.shape_cast %55 : vector<4x128xf32> to vector<1x4x128xf32>
    tpu.vector_store %arg5[%c0_21, %c0_22, %c0_23], %58 {strides = array<i32>} : memref<3x4x128xf32, #tpu.memory_space<vmem>>, vector<1x4x128xf32>,
    %c1_24 = arith.constant 1 : index
    %c0_25 = arith.constant 0 : index
    %c0_26 = arith.constant 0 : index
    %59 = vector.load %arg5[%c1_24, %c0_25, %c0_26] : memref<3x4x128xf32, #tpu.memory_space<vmem>>, vector<1x4x128xf32>
    %60 = vector.shape_cast %59 : vector<1x4x128xf32> to vector<4x128xf32>
    %cst_27 = arith.constant dense<0.000000e+00> : vector<4x128xf32>
    %61 = vector.multi_reduction <add>, %49, %cst_27 [1] : vector<4x2x128xf32> to vector<4x128xf32>
    %62 = arith.addf %60, %61 : vector<4x128xf32>
    %c1_28 = arith.constant 1 : index
    %c0_29 = arith.constant 0 : index
    %c0_30 = arith.constant 0 : index
    %63 = vector.load %arg5[%c1_28, %c0_29, %c0_30] : memref<3x4x128xf32, #tpu.memory_space<vmem>>, vector<1x4x128xf32>
    %64 = vector.shape_cast %63 : vector<1x4x128xf32> to vector<4x128xf32>
    %65 = vector.shape_cast %62 : vector<4x128xf32> to vector<1x4x128xf32>
    tpu.vector_store %arg5[%c1_28, %c0_29, %c0_30], %65 {strides = array<i32>} : memref<3x4x128xf32, #tpu.memory_space<vmem>>, vector<1x4x128xf32>,
    %c2 = arith.constant 2 : index
    %c0_31 = arith.constant 0 : index
    %c0_32 = arith.constant 0 : index
    %66 = vector.load %arg5[%c2, %c0_31, %c0_32] : memref<3x4x128xf32, #tpu.memory_space<vmem>>, vector<1x4x128xf32>
    %67 = vector.shape_cast %66 : vector<1x4x128xf32> to vector<4x128xf32>
    %cst_33 = arith.constant dense<0.000000e+00> : vector<4x128xf32>
    %68 = vector.multi_reduction <add>, %51, %cst_33 [1] : vector<4x2x128xf32> to vector<4x128xf32>
    %69 = arith.addf %67, %68 : vector<4x128xf32>
    %c2_34 = arith.constant 2 : index
    %c0_35 = arith.constant 0 : index
    %c0_36 = arith.constant 0 : index
    %70 = vector.load %arg5[%c2_34, %c0_35, %c0_36] : memref<3x4x128xf32, #tpu.memory_space<vmem>>, vector<1x4x128xf32>
    %71 = vector.shape_cast %70 : vector<1x4x128xf32> to vector<4x128xf32>
    %72 = vector.shape_cast %69 : vector<4x128xf32> to vector<1x4x128xf32>
    tpu.vector_store %arg5[%c2_34, %c0_35, %c0_36], %72 {strides = array<i32>} : memref<3x4x128xf32, #tpu.memory_space<vmem>>, vector<1x4x128xf32>,
    %c0_i32_37 = arith.constant 0 : i32
    %73 = arith.cmpi eq, %arg1, %c0_i32_37 : i32
    %74 = arith.extui %73 : i1 to i32
    %c0_i32_38 = arith.constant 0 : i32
    %75 = arith.cmpi ne, %74, %c0_i32_38 : i32
    scf.if %75 {
      %c0_39 = arith.constant 0 : index
      %c0_40 = arith.constant 0 : index
      %c0_41 = arith.constant 0 : index
      %76 = vector.load %arg5[%c0_39, %c0_40, %c0_41] : memref<3x4x128xf32, #tpu.memory_space<vmem>>, vector<3x4x128xf32>
      %c0_42 = arith.constant 0 : index
      %c0_43 = arith.constant 0 : index
      %c0_44 = arith.constant 0 : index
      %c0_45 = arith.constant 0 : index
      %77 = vector.load %arg4[%c0_42, %c0_43, %c0_44, %c0_45] : memref<1x3x4x128xf32, #tpu.memory_space<vmem>>, vector<1x3x4x128xf32>
      %78 = vector.shape_cast %77 : vector<1x3x4x128xf32> to vector<3x4x128xf32>
      %79 = vector.shape_cast %76 : vector<3x4x128xf32> to vector<1x3x4x128xf32>
      tpu.vector_store %arg4[%c0_42, %c0_43, %c0_44, %c0_45], %79 {strides = array<i32>} : memref<1x3x4x128xf32, #tpu.memory_space<vmem>>, vector<1x3x4x128xf32>,
    } else {
    }
    return
  }
  func.func @transform_0(%arg0: i32, %arg1: i32) -> (i32, i32, i32, i32) {
    %c1_i32 = arith.constant 1 : i32
    %0 = arith.muli %arg0, %c1_i32 : i32
    %1 = arith.addi %0, %arg1 : i32
    %c0_i32 = arith.constant 0 : i32
    %c0_i32_0 = arith.constant 0 : i32
    %c0_i32_1 = arith.constant 0 : i32
    %c0_i32_2 = arith.constant 0 : i32
    return %c0_i32, %c0_i32_0, %1, %c0_i32_1 : i32, i32, i32, i32
  }
  func.func @transform_1(%arg0: i32, %arg1: i32) -> (i32, i32, i32, i32) {
    %c1_i32 = arith.constant 1 : i32
    %0 = arith.muli %arg0, %c1_i32 : i32
    %1 = arith.addi %0, %arg1 : i32
    %c0_i32 = arith.constant 0 : i32
    %c0_i32_0 = arith.constant 0 : i32
    %c0_i32_1 = arith.constant 0 : i32
    %c0_i32_2 = arith.constant 0 : i32
    return %c0_i32, %c0_i32_0, %1, %c0_i32_1 : i32, i32, i32, i32
  }
  func.func @transform_2(%arg0: i32, %arg1: i32) -> (i32, i32, i32, i32) {
    %c0_i32 = arith.constant 0 : i32
    %c0_i32_0 = arith.constant 0 : i32
    %c0_i32_1 = arith.constant 0 : i32
    %c0_i32_2 = arith.constant 0 : i32
    return %arg0, %c0_i32, %c0_i32_0, %c0_i32_1 : i32, i32, i32, i32
  }
}

</mosaic_0001>

<llo_original>
// kernel: tpu_custom_call.1
$region0: #{tpu_custom_call.1}
  #allocation0 [shape = 'u32[]', space=smem, size = 0x4, offset = 0x4, fixed_abs, tag = 'smem constant byte address 0x4 - core index']
  #allocation1 [shape = 'u32[72,128]{1,0:T(1,128)}', space=vmem, size = 0x9000, scoped, tag = 'internal scratch']
  #allocation2 [shape = 'f32[3,4,128]{2,1,0:T(4,128)}', space=vmem, size = 0x1800, scoped, tag = 'scratch operand']
  %s0 = inlined_call_operand.hbm [shape: f32[2,4,2,128], index: 0, kind: input, shape index: {}]
  %s1 = inlined_call_operand.hbm [shape: f32[2,4,2,128], index: 1, kind: input, shape index: {}]
  %s2 = inlined_call_operand.hbm [shape: f32[1,3,4,128], index: 2, kind: output, shape index: {}]
  %s3 = sld [smem:[#allocation0]]
  $region34: #{tpu_custom_call.1} parent=0
    _
  %s5 = ssub.s32 1, %s3
  %s6 = scalar_select 0, %s5, %s3
  $region1: #{tpu_custom_call.1} parent=0
    #allocation3 [shape = 'u8[8192]{0}', space=vmem, size = 0x2000, scoped, tag = 'input window, operand 0, single buffered']
    #allocation4 [shape = 's32[1]{0}', space=sflag, size = 0x4, scoped, tag = 'scoped memory for tpu_custom_call.1']
    #allocation5 [shape = 's32[1]{0}', space=sflag, size = 0x4, scoped, tag = 'scoped memory for tpu_custom_call.1']
    #allocation6 [shape = 'u8[8192]{0}', space=vmem, size = 0x2000, scoped, tag = 'input window, operand 1, single buffered']
    #allocation7 [shape = 's32[1]{0}', space=sflag, size = 0x4, scoped, tag = 'scoped memory for tpu_custom_call.1']
    #allocation8 [shape = 'u8[6144]{0}', space=vmem, size = 0x1800, scoped, tag = 'output window, operand 0, single buffered']
    %7 = vsyncpa [#allocation4], 0
    %8 = vsyncpa [#allocation7], 0
    %9 = vsyncpa [#allocation5], 0
    // Predicated region
    $region2: #{tpu_custom_call.1} parent=1 // pred_check
      _
    $region3: #{tpu_custom_call.1} parent=1 // pred_check_branch
      %11 = sbr.rel (0) target = $region5
    $region4: #{tpu_custom_call.1} parent=1 // pred_region
      %s12 = sadd.s32 0, 0
      %14 = vsyncadd [#allocation4], 0
      %s15 = smul.addr %s12, 2
      %s16 = scalar_lea.hbm %s0, %s15
      %s17 = sshll.u32 %s16, 4
      %s18 = int_to_ptr.hbm [resolvable:$true] %s17
      %s19 = sshll.u32 [#allocation3], 4
      %s20 = int_to_ptr.vmem [resolvable:$true] %s19
      %25 = dma.hbm_to_vmem [thread:$0]  %s18, 256, %s20, [#allocation4], 32, 32, 2
    $region5: #{tpu_custom_call.1} parent=1 // pred_fallthru
      _
    // Predicated region
    $region6: #{tpu_custom_call.1} parent=1 // pred_check
      _
    $region7: #{tpu_custom_call.1} parent=1 // pred_check_branch
      %27 = sbr.rel (0) target = $region9
    $region8: #{tpu_custom_call.1} parent=1 // pred_region
      %s28 = sadd.s32 0, 0
      %30 = vsyncadd [#allocation7], 0
      %s31 = smul.addr %s28, 2
      %s32 = scalar_lea.hbm %s1, %s31
      %s33 = sshll.u32 %s32, 4
      %s34 = int_to_ptr.hbm [resolvable:$true] %s33
      %s35 = sshll.u32 [#allocation6], 4
      %s36 = int_to_ptr.vmem [resolvable:$true] %s35
      %41 = dma.hbm_to_vmem [thread:$0]  %s34, 256, %s36, [#allocation7], 32, 32, 2
    $region9: #{tpu_custom_call.1} parent=1 // pred_fallthru
      _
    // Predicated region
    $region10: #{tpu_custom_call.1} parent=1 // pred_check
      _
    $region11: #{tpu_custom_call.1} parent=1 // pred_check_branch
      %43 = sbr.rel (0) target = $region13
    $region12: #{tpu_custom_call.1} parent=1 // pred_region
      %45 = dma.done [#allocation4], 256
    $region13: #{tpu_custom_call.1} parent=1 // pred_fallthru
      _
    // Predicated region
    $region14: #{tpu_custom_call.1} parent=1 // pred_check
      _
    $region15: #{tpu_custom_call.1} parent=1 // pred_check_branch
      %47 = sbr.rel (0) target = $region17
    $region16: #{tpu_custom_call.1} parent=1 // pred_region
      %49 = dma.done [#allocation7], 256
    $region17: #{tpu_custom_call.1} parent=1 // pred_fallthru
      _
    %s50 = sadd.s32 0, 0
    %s51 = sadd.s32 0, 0
    %p52 = scmp.eq.s32.totalorder 0, 0
    // Predicated region
    $region18: #{tpu_custom_call.1} parent=1 // pred_check
      %p53 = pneg %p52
    $region19: #{tpu_custom_call.1} parent=1 // pred_check_branch
      %55 = sbr.rel (%p53) target = $region21
    $region20: #{tpu_custom_call.1} parent=1 // pred_region
      %56 = vst [vmem:[#allocation2] sm:$0xf] 0.0
      %57 = vst [vmem:[#allocation2 + $0x4] sm:$0xf] 0.0
      %58 = vst [vmem:[#allocation2 + $0x8] sm:$0xf] 0.0
    $region21: #{tpu_custom_call.1} parent=1 // pred_fallthru
      _
    %v59 = vld [vmem:[#allocation3] sm:$0x3]
    %v60 = vld [vmem:[#allocation3 + $0x2] sm:$0x3]
    %v61 = vld [vmem:[#allocation3 + $0x4] sm:$0x3]
    %v62 = vld [vmem:[#allocation3 + $0x6] sm:$0x3]
    %v63 = vld [vmem:[#allocation6] sm:$0x3]
    %v64 = vld [vmem:[#allocation6 + $0x2] sm:$0x3]
    %v65 = vld [vmem:[#allocation6 + $0x4] sm:$0x3]
    %v66 = vld [vmem:[#allocation6 + $0x6] sm:$0x3]
    %vm67 = vcmask 1041408
    %v68 = vsel %vm67, %v59, -inf
    %v69 = vsel %vm67, %v60, -inf
    %v70 = vsel %vm67, %v61, -inf
    %v71 = vsel %vm67, %v62, -inf
    %v72 = vmax.f32 %v68, %v69
    %v73 = vmax.f32 %v70, %v71
    %v74 = vmax.f32 %v72, %v73
    %v75 = vsub.f32 %v59, %v74
    %v76 = vsub.f32 %v60, %v74
    %v77 = vsub.f32 %v61, %v74
    %v78 = vsub.f32 %v62, %v74
    %v79 = vmul.f32 %v75, 1.442695
    %v80 = vpow.pop %v79
    %v81 = vmul.f32 %v76, 1.442695
    %v82 = vpow.pop %v81
    %v83 = vmul.f32 %v77, 1.442695
    %v84 = vpow.pop %v83
    %v85 = vmul.f32 %v78, 1.442695
    %v86 = vpow.pop %v85
    %v87 = vsel %vm67, %v80, 0.0
    %v88 = vsel %vm67, %v82, 0.0
    %v89 = vadd.f32 %v87, %v88
    %v90 = vsel %vm67, %v84, 0.0
    %v91 = vadd.f32 %v89, %v90
    %v92 = vsel %vm67, %v86, 0.0
    %v93 = vadd.f32 %v91, %v92
    %v94 = vrcp.pop %v93
    %v95 = vmul.f32 %v80, %v94
    %v96 = vmul.f32 %v82, %v94
    %v97 = vmul.f32 %v84, %v94
    %v98 = vmul.f32 %v86, %v94
    %v99 = vmul.f32 %v95, %v63
    %v100 = vmul.f32 %v96, %v64
    %v101 = vmul.f32 %v97, %v65
    %v102 = vmul.f32 %v98, %v66
    %v103 = vadd.f32 %v99, 0.0
    %v104 = vadd.f32 %v100, 0.0
    %v105 = vadd.f32 %v101, 0.0
    %v106 = vadd.f32 %v102, 0.0
    %v107 = vmul.f32 %v63, %v63
    %v108 = vmul.f32 %v64, %v64
    %v109 = vmul.f32 %v65, %v65
    %v110 = vmul.f32 %v66, %v66
    %v111 = vadd.f32 %v107, 0.0
    %v112 = vadd.f32 %v108, 0.0
    %v113 = vadd.f32 %v109, 0.0
    %v114 = vadd.f32 %v110, 0.0
    %v115 = vmul.f32 %v95, %v95
    %v116 = vmul.f32 %v96, %v96
    %v117 = vmul.f32 %v97, %v97
    %v118 = vmul.f32 %v98, %v98
    %v119 = vadd.f32 %v115, 0.0
    %v120 = vadd.f32 %v116, 0.0
    %v121 = vadd.f32 %v117, 0.0
    %v122 = vadd.f32 %v118, 0.0
    %s123 = sadd.s32 0, 8
    %s124 = scalar_lea.vmem [#allocation3], %s123
    %v125 = vld [vmem:[%s124] sm:$0x3]
    %v126 = vld [vmem:[%s124 + $0x2] sm:$0x3]
    %v127 = vld [vmem:[%s124 + $0x4] sm:$0x3]
    %v128 = vld [vmem:[%s124 + $0x6] sm:$0x3]
    %s129 = scalar_lea.vmem [#allocation6], %s123
    %v130 = vld [vmem:[%s129] sm:$0x3]
    %v131 = vld [vmem:[%s129 + $0x2] sm:$0x3]
    %v132 = vld [vmem:[%s129 + $0x4] sm:$0x3]
    %v133 = vld [vmem:[%s129 + $0x6] sm:$0x3]
    %v134 = vsel %vm67, %v125, -inf
    %v135 = vsel %vm67, %v126, -inf
    %v136 = vsel %vm67, %v127, -inf
    %v137 = vsel %vm67, %v128, -inf
    %v138 = vmax.f32 %v134, %v135
    %v139 = vmax.f32 %v136, %v137
    %v140 = vmax.f32 %v138, %v139
    %v141 = vsub.f32 %v125, %v140
    %v142 = vsub.f32 %v126, %v140
    %v143 = vsub.f32 %v127, %v140
    %v144 = vsub.f32 %v128, %v140
    %v145 = vmul.f32 %v141, 1.442695
    %v146 = vpow.pop %v145
    %v147 = vmul.f32 %v142, 1.442695
    %v148 = vpow.pop %v147
    %v149 = vmul.f32 %v143, 1.442695
    %v150 = vpow.pop %v149
    %v151 = vmul.f32 %v144, 1.442695
    %v152 = vpow.pop %v151
    %v153 = vsel %vm67, %v146, 0.0
    %v154 = vsel %vm67, %v148, 0.0
    %v155 = vadd.f32 %v153, %v154
    %v156 = vsel %vm67, %v150, 0.0
    %v157 = vadd.f32 %v155, %v156
    %v158 = vsel %vm67, %v152, 0.0
    %v159 = vadd.f32 %v157, %v158
    %v160 = vrcp.pop %v159
    %v161 = vmul.f32 %v146, %v160
    %v162 = vmul.f32 %v148, %v160
    %v163 = vmul.f32 %v150, %v160
    %v164 = vmul.f32 %v152, %v160
    %v165 = vmul.f32 %v161, %v130
    %v166 = vmul.f32 %v162, %v131
    %v167 = vmul.f32 %v163, %v132
    %v168 = vmul.f32 %v164, %v133
    %v169 = vadd.f32 %v103, %v165
    %v170 = vadd.f32 %v104, %v166
    %v171 = vadd.f32 %v105, %v167
    %v172 = vadd.f32 %v106, %v168
    %v173 = vmul.f32 %v130, %v130
    %v174 = vmul.f32 %v131, %v131
    %v175 = vmul.f32 %v132, %v132
    %v176 = vmul.f32 %v133, %v133
    %v177 = vadd.f32 %v111, %v173
    %v178 = vadd.f32 %v112, %v174
    %v179 = vadd.f32 %v113, %v175
    %v180 = vadd.f32 %v114, %v176
    %v181 = vmul.f32 %v161, %v161
    %v182 = vmul.f32 %v162, %v162
    %v183 = vmul.f32 %v163, %v163
    %v184 = vmul.f32 %v164, %v164
    %v185 = vadd.f32 %v119, %v181
    %v186 = vadd.f32 %v120, %v182
    %v187 = vadd.f32 %v121, %v183
    %v188 = vadd.f32 %v122, %v184
    %v189 = vld [vmem:[#allocation2] sm:$0xf]
    %v190 = vsel %vm67, %v169, 0.0
    %v191 = vrot.slane %v190, 4
    %v192 = vadd.f32 %v190, %v191
    %v193 = vrot.slane %v192, 2
    %v194 = vadd.f32 %v192, %v193
    %v195 = vrot.slane %v194, 1
    %v196 = vadd.f32 %v194, %v195
    %v197 = vsel %vm67, %v170, 0.0
    %v198 = vrot.slane %v197, 4
    %v199 = vadd.f32 %v197, %v198
    %v200 = vrot.slane %v199, 2
    %v201 = vadd.f32 %v199, %v200
    %v202 = vrot.slane %v201, 1
    %v203 = vadd.f32 %v201, %v202
    %v204 = vsel %vm67, %v171, 0.0
    %v205 = vrot.slane %v204, 4
    %v206 = vadd.f32 %v204, %v205
    %v207 = vrot.slane %v206, 2
    %v208 = vadd.f32 %v206, %v207
    %v209 = vrot.slane %v208, 1
    %v210 = vadd.f32 %v208, %v209
    %v211 = vsel %vm67, %v172, 0.0
    %v212 = vrot.slane %v211, 4
    %v213 = vadd.f32 %v211, %v212
    %v214 = vrot.slane %v213, 2
    %v215 = vadd.f32 %v213, %v214
    %v216 = vrot.slane %v215, 1
    %v217 = vadd.f32 %v215, %v216
    %vm222 = vcmask 1041409
    %v223 = vsel %vm222, %v203, %v196
    %vm224 = vcmask 1042434
    %v225 = vsel %vm224, %v210, %v223
    %vm226 = vcmask 1043459
    %v227 = vsel %vm226, %v217, %v225
    %v229 = vadd.f32 %v189, %v227
    %230 = vst [vmem:[#allocation2] sm:$0xf] %v229
    %s231 = scalar_lea.vmem [#allocation2], 4
    %v232 = vld [vmem:[%s231] sm:$0xf]
    %v233 = vsel %vm67, %v177, 0.0
    %v234 = vrot.slane %v233, 4
    %v235 = vadd.f32 %v233, %v234
    %v236 = vrot.slane %v235, 2
    %v237 = vadd.f32 %v235, %v236
    %v238 = vrot.slane %v237, 1
    %v239 = vadd.f32 %v237, %v238
    %v240 = vsel %vm67, %v178, 0.0
    %v241 = vrot.slane %v240, 4
    %v242 = vadd.f32 %v240, %v241
    %v243 = vrot.slane %v242, 2
    %v244 = vadd.f32 %v242, %v243
    %v245 = vrot.slane %v244, 1
    %v246 = vadd.f32 %v244, %v245
    %v247 = vsel %vm67, %v179, 0.0
    %v248 = vrot.slane %v247, 4
    %v249 = vadd.f32 %v247, %v248
    %v250 = vrot.slane %v249, 2
    %v251 = vadd.f32 %v249, %v250
    %v252 = vrot.slane %v251, 1
    %v253 = vadd.f32 %v251, %v252
    %v254 = vsel %vm67, %v180, 0.0
    %v255 = vrot.slane %v254, 4
    %v256 = vadd.f32 %v254, %v255
    %v257 = vrot.slane %v256, 2
    %v258 = vadd.f32 %v256, %v257
    %v259 = vrot.slane %v258, 1
    %v260 = vadd.f32 %v258, %v259
    %v265 = vsel %vm222, %v246, %v239
    %v266 = vsel %vm224, %v253, %v265
    %v267 = vsel %vm226, %v260, %v266
    %v269 = vadd.f32 %v232, %v267
    %270 = vst [vmem:[%s231] sm:$0xf] %v269
    %s271 = scalar_lea.vmem [#allocation2], 8
    %v272 = vld [vmem:[%s271] sm:$0xf]
    %v273 = vsel %vm67, %v185, 0.0
    %v274 = vrot.slane %v273, 4
    %v275 = vadd.f32 %v273, %v274
    %v276 = vrot.slane %v275, 2
    %v277 = vadd.f32 %v275, %v276
    %v278 = vrot.slane %v277, 1
    %v279 = vadd.f32 %v277, %v278
    %v280 = vsel %vm67, %v186, 0.0
    %v281 = vrot.slane %v280, 4
    %v282 = vadd.f32 %v280, %v281
    %v283 = vrot.slane %v282, 2
    %v284 = vadd.f32 %v282, %v283
    %v285 = vrot.slane %v284, 1
    %v286 = vadd.f32 %v284, %v285
    %v287 = vsel %vm67, %v187, 0.0
    %v288 = vrot.slane %v287, 4
    %v289 = vadd.f32 %v287, %v288
    %v290 = vrot.slane %v289, 2
    %v291 = vadd.f32 %v289, %v290
    %v292 = vrot.slane %v291, 1
    %v293 = vadd.f32 %v291, %v292
    %v294 = vsel %vm67, %v188, 0.0
    %v295 = vrot.slane %v294, 4
    %v296 = vadd.f32 %v294, %v295
    %v297 = vrot.slane %v296, 2
    %v298 = vadd.f32 %v296, %v297
    %v299 = vrot.slane %v298, 1
    %v300 = vadd.f32 %v298, %v299
    %v305 = vsel %vm222, %v286, %v279
    %v306 = vsel %vm224, %v293, %v305
    %v307 = vsel %vm226, %v300, %v306
    %v309 = vadd.f32 %v272, %v307
    %310 = vst [vmem:[%s271] sm:$0xf] %v309
    // Predicated region
    $region22: #{tpu_custom_call.1} parent=1 // pred_check
      %p311 = pneg %p52
    $region23: #{tpu_custom_call.1} parent=1 // pred_check_branch
      %313 = sbr.rel (%p311) target = $region25
    $region24: #{tpu_custom_call.1} parent=1 // pred_region
      %v314 = vld [vmem:[#allocation2] sm:$0xf]
      %v315 = vld [vmem:[#allocation2 + $0x4] sm:$0xf]
      %v316 = vld [vmem:[#allocation2 + $0x8] sm:$0xf]
      %317 = vst [vmem:[#allocation8] sm:$0xf] %v314
      %318 = vst [vmem:[#allocation8 + $0x4] sm:$0xf] %v315
      %319 = vst [vmem:[#allocation8 + $0x8] sm:$0xf] %v316
    $region25: #{tpu_custom_call.1} parent=1 // pred_fallthru
      _
    // Predicated region
    $region26: #{tpu_custom_call.1} parent=1 // pred_check
      _
    $region27: #{tpu_custom_call.1} parent=1 // pred_check_branch
      %321 = sbr.rel (0) target = $region29
    $region28: #{tpu_custom_call.1} parent=1 // pred_region
      %323 = vsyncadd [#allocation5], 0
      %s324 = sshll.u32 [#allocation8], 4
      %s325 = int_to_ptr.vmem [resolvable:$true] %s324
      %s326 = sshll.u32 %s2, 4
      %s327 = int_to_ptr.hbm [resolvable:$true] %s326
      %332 = dma.vmem_to_hbm [thread:$0]  %s325, 192, %s327, [#allocation5], 64, 64, 4
    $region29: #{tpu_custom_call.1} parent=1 // pred_fallthru
      _
    // Predicated region
    $region30: #{tpu_custom_call.1} parent=1 // pred_check
      _
    $region31: #{tpu_custom_call.1} parent=1 // pred_check_branch
      %334 = sbr.rel (0) target = $region33
    $region32: #{tpu_custom_call.1} parent=1 // pred_region
      %336 = dma.done [#allocation5], 192
    $region33: #{tpu_custom_call.1} parent=1 // pred_fallthru
      _
    %337 = vsyncpa [#allocation4], 1
    %338 = vsyncpa [#allocation7], 1
    %339 = vsyncpa [#allocation5], 1

</llo_original>
